<compile_context>
chip_gen: v7x
topology: tpu7x:2x2x1
jax: 0.10.0
libtpu: 0.0.40
codegen_flags: <defaults>
</compile_context>

<pallas_src>
import jax
import jax.numpy as jnp
import numpy as np
from jax.experimental import pallas as pl
from jax.experimental.pallas import tpu as pltpu

EPS = 1e-5


def _round_up(n, m):
    return ((n + m - 1) // m) * m


def _patch_embed_kernel(xp_ref, w_ref, pvec_ref, o_ref):
    # xp_ref : (tile, K)        im2col patch rows
    # w_ref  : (K, C_out)       conv weight as GEMM matrix (resident)
    # pvec_ref: (3, C_out)      row 0 = conv bias, row 1 = LN gamma, row 2 = LN beta
    # o_ref  : (tile, C_out)
    pv = pvec_ref[...].astype(jnp.float32)
    bias = pv[0:1, :]
    gamma = pv[1:2, :]
    beta = pv[2:3, :]

    # --- proj: patchify conv == GEMM on the MXU (f32 accumulate) ---
    y = jnp.dot(xp_ref[...], w_ref[...], preferred_element_type=jnp.float32)
    y = y + bias

    # --- norm_layer: LayerNorm over the channel dim (biased variance, PyTorch eps) ---
    mu = jnp.mean(y, axis=-1, keepdims=True)
    var = jnp.mean((y - mu) ** 2, axis=-1, keepdims=True)
    yn = (y - mu) * jax.lax.rsqrt(var + EPS)
    yn = yn * gamma + beta

    # --- pos_drop: identity (p = 0.0 / eval) ---
    o_ref[...] = yn.astype(o_ref.dtype)


def patch_embed(x, params, *, patch_size=4, tile_tokens=256,
                out_dtype=jnp.float32, use_bf16_matmul=False):
    """x: (B, C_in, H, W) with H, W divisible by patch_size. Returns (B, L, C_out)."""
    assert tile_tokens % 8 == 0, "tile_tokens must be a multiple of 8"
    B, C_in, H, W = x.shape
    p = patch_size
    assert H % p == 0 and W % p == 0, "spatial dims must be divisible by patch_size"
    Hp, Wp = H // p, W // p
    L = Hp * Wp
    K = C_in * p * p

    # Weight prep (host side): Conv2d weight (C_out, C_in, p, p) -> GEMM matrix (K, C_out),
    # flattening order (C_in, kh, kw) matches the im2col row layout below.
    w = params["proj_weight"].reshape(-1, K).T           # (K, C_out)
    C_out = w.shape[1]
    pvec = jnp.stack([
        params["proj_bias"].reshape(C_out),
        params["norm_weight"].reshape(C_out),
        params["norm_bias"].reshape(C_out),
    ], axis=0)                                           # (3, C_out)

    # im2col for non-overlapping patches (pure layout glue, done once outside the kernel):
    # (B, C, Hp, p, Wp, p) -> (B, Hp, Wp, C, p, p) -> (B*L, C*p*p)
    xp = x.reshape(B, C_in, Hp, p, Wp, p).transpose(0, 2, 4, 1, 3, 5).reshape(B * L, K)

    N = B * L
    tile = min(tile_tokens, _round_up(N, 8))             # big tiles; shrink for tiny inputs
    N_pad = _round_up(N, tile)
    if N_pad != N:
        xp = jnp.pad(xp, ((0, N_pad - N), (0, 0)))

    if use_bf16_matmul:
        xp = xp.astype(jnp.bfloat16)
        w = w.astype(jnp.bfloat16)

    grid = (N_pad // tile,)
    itemsize_in = jnp.dtype(xp.dtype).itemsize
    cost = pl.CostEstimate(
        flops=2 * N_pad * K * C_out + 10 * N_pad * C_out,
        transcendentals=0,
        bytes_accessed=(N_pad * K * itemsize_in
                        + K * C_out * itemsize_in
                        + 3 * C_out * 4
                        + N_pad * C_out * jnp.dtype(out_dtype).itemsize),
    )

    out_flat = pl.pallas_call(
        _patch_embed_kernel,
        out_shape=jax.ShapeDtypeStruct((N_pad, C_out), out_dtype),
        grid_spec=pltpu.PrefetchScalarGridSpec(
            num_scalar_prefetch=0,
            grid=grid,
            in_specs=[
                pl.BlockSpec((tile, K), lambda i: (i, 0)),       # patch rows (tiled)
                pl.BlockSpec((K, C_out), lambda i: (0, 0)),      # conv weight (resident)
                pl.BlockSpec((3, C_out), lambda i: (0, 0)),      # bias / gamma / beta (resident)
            ],
            out_specs=pl.BlockSpec((tile, C_out), lambda i: (i, 0)),  # lane-dense output
        ),
        compiler_params=pltpu.CompilerParams(
            dimension_semantics=("parallel",)),
        cost_estimate=cost,
    )(xp, w, pvec)

    return out_flat[:N].reshape(B, L, C_out)


def _reference(x, params, patch_size=4):
    """Pure-JAX reference mirroring the PyTorch forward exactly."""
    w = params["proj_weight"]                            # (C_out, C_in, p, p)
    b = params["proj_bias"]
    y = jax.lax.conv_general_dilated(
        x, w, window_strides=(patch_size, patch_size), padding="VALID",
        dimension_numbers=("NCHW", "OIHW", "NCHW"))
    y = y + b[None, :, None, None]
    B, C_out, Hp, Wp = y.shape
    y = y.reshape(B, C_out, Hp * Wp).transpose(0, 2, 1)  # flatten(2).transpose(1,2)
    mu = jnp.mean(y, axis=-1, keepdims=True)
    var = jnp.mean((y - mu) ** 2, axis=-1, keepdims=True)
    y = (y - mu) * jax.lax.rsqrt(var + EPS) * params["norm_weight"] + params["norm_bias"]
    return y


if __name__ == "__main__":
    B, C_in, H, W = 2, 4, 16, 16
    patch_size = 4
    C_out = 128                                          # lane-dense channel dim

    key = jax.random.PRNGKey(0)
    k_x, k_w, k_b, k_g, k_bt = jax.random.split(key, 5)

    x = jax.random.normal(k_x, (B, C_in, H, W), dtype=jnp.float32)
    params = {
        "proj_weight": 0.05 * jax.random.normal(
            k_w, (C_out, C_in, patch_size, patch_size), jnp.float32),
        "proj_bias": 0.1 * jax.random.normal(k_b, (C_out,), jnp.float32),
        "norm_weight": 1.0 + 0.1 * jax.random.normal(k_g, (C_out,), jnp.float32),
        "norm_bias": 0.1 * jax.random.normal(k_bt, (C_out,), jnp.float32),
    }

    out = patch_embed(x, params, patch_size=patch_size, tile_tokens=256)
    out = jax.block_until_ready(out)

    ref = jax.block_until_ready(_reference(x, params, patch_size=patch_size))
    L = (H // patch_size) * (W // patch_size)
    assert out.shape == (B, L, C_out), out.shape
    np.testing.assert_allclose(np.asarray(out), np.asarray(ref), rtol=1e-4, atol=1e-4)

    print("KERNEL_OK")
</pallas_src>

<mosaic_0001>
module attributes {stable_mosaic.version = 11 : i64} {
  func.func @_patch_embed_kernel(%arg0: i32, %arg1: memref<32x64xf32, #tpu.memory_space<vmem>>, %arg2: memref<64x128xf32, #tpu.memory_space<vmem>>, %arg3: memref<3x128xf32, #tpu.memory_space<vmem>>, %arg4: memref<32x128xf32, #tpu.memory_space<vmem>>) attributes {dimension_semantics = [#tpu.dimension_semantics<parallel>], iteration_bounds = array<i64: 1>, scalar_prefetch = 0 : i64, scratch_operands = 0 : i64, tpu.core_type = #tpu.core_type<tc>, window_params = [{transform_indices = @transform_0, window_bounds = array<i64: 32, 64>}, {pipeline_mode = #tpu.pipeline_mode<synchronous>, transform_indices = @transform_1, window_bounds = array<i64: 64, 128>}, {pipeline_mode = #tpu.pipeline_mode<synchronous>, transform_indices = @transform_2, window_bounds = array<i64: 3, 128>}, {transform_indices = @transform_3, window_bounds = array<i64: 32, 128>}]} {
    %c0 = arith.constant 0 : index
    %c0_0 = arith.constant 0 : index
    %0 = vector.load %arg3[%c0, %c0_0] : memref<3x128xf32, #tpu.memory_space<vmem>>, vector<3x128xf32>
    %1 = vector.extract_strided_slice %0 {offsets = [0, 0], sizes = [1, 128], strides = [1, 1]} : vector<3x128xf32> to vector<1x128xf32>
    %2 = vector.extract_strided_slice %0 {offsets = [1, 0], sizes = [1, 128], strides = [1, 1]} : vector<3x128xf32> to vector<1x128xf32>
    %3 = vector.extract_strided_slice %0 {offsets = [2, 0], sizes = [1, 128], strides = [1, 1]} : vector<3x128xf32> to vector<1x128xf32>
    %c0_1 = arith.constant 0 : index
    %c0_2 = arith.constant 0 : index
    %4 = vector.load %arg1[%c0_1, %c0_2] : memref<32x64xf32, #tpu.memory_space<vmem>>, vector<32x64xf32>
    %c0_3 = arith.constant 0 : index
    %c0_4 = arith.constant 0 : index
    %5 = vector.load %arg2[%c0_3, %c0_4] : memref<64x128xf32, #tpu.memory_space<vmem>>, vector<64x128xf32>
    %cst = arith.constant dense<0.000000e+00> : vector<32x128xf32>
    %6 = tpu.matmul %4, %5, %cst {dimension_numbers = #tpu.dot_dimension_numbers<[1], [0], [0], [1], [0, 0, 1, 1], [], []>} : vector<32x64xf32>, vector<64x128xf32>, vector<32x128xf32> -> vector<32x128xf32>
    %7 = vector.broadcast %1 : vector<1x128xf32> to vector<32x128xf32>
    %8 = arith.addf %6, %7 : vector<32x128xf32>
    %cst_5 = arith.constant dense<0.000000e+00> : vector<32xf32>
    %9 = vector.multi_reduction <add>, %8, %cst_5 [1] : vector<32x128xf32> to vector<32xf32>
    %10 = vector.shape_cast %9 : vector<32xf32> to vector<32x1xf32>
    %cst_6 = arith.constant 1.280000e+02 : f32
    %11 = vector.broadcast %cst_6 : f32 to vector<32x1xf32>
    %12 = arith.divf %10, %11 : vector<32x1xf32>
    %13 = vector.broadcast %12 : vector<32x1xf32> to vector<32x128xf32>
    %14 = arith.subf %8, %13 : vector<32x128xf32>
    %15 = arith.mulf %14, %14 : vector<32x128xf32>
    %cst_7 = arith.constant dense<0.000000e+00> : vector<32xf32>
    %16 = vector.multi_reduction <add>, %15, %cst_7 [1] : vector<32x128xf32> to vector<32xf32>
    %17 = vector.shape_cast %16 : vector<32xf32> to vector<32x1xf32>
    %cst_8 = arith.constant 1.280000e+02 : f32
    %18 = vector.broadcast %cst_8 : f32 to vector<32x1xf32>
    %19 = arith.divf %17, %18 : vector<32x1xf32>
    %20 = vector.broadcast %12 : vector<32x1xf32> to vector<32x128xf32>
    %21 = arith.subf %8, %20 : vector<32x128xf32>
    %cst_9 = arith.constant 9.99999974E-6 : f32
    %22 = vector.broadcast %cst_9 : f32 to vector<32x1xf32>
    %23 = arith.addf %19, %22 : vector<32x1xf32>
    %24 = math.rsqrt %23 : vector<32x1xf32>
    %25 = vector.broadcast %24 : vector<32x1xf32> to vector<32x128xf32>
    %26 = arith.mulf %21, %25 : vector<32x128xf32>
    %27 = vector.broadcast %2 : vector<1x128xf32> to vector<32x128xf32>
    %28 = arith.mulf %26, %27 : vector<32x128xf32>
    %29 = vector.broadcast %3 : vector<1x128xf32> to vector<32x128xf32>
    %30 = arith.addf %28, %29 : vector<32x128xf32>
    %c0_10 = arith.constant 0 : index
    %c0_11 = arith.constant 0 : index
    %31 = vector.load %arg4[%c0_10, %c0_11] : memref<32x128xf32, #tpu.memory_space<vmem>>, vector<32x128xf32>
    tpu.vector_store %arg4[%c0_10, %c0_11], %30 {strides = array<i32>} : memref<32x128xf32, #tpu.memory_space<vmem>>, vector<32x128xf32>,
    return
  }
  func.func @transform_0(%arg0: i32) -> (i32, i32) {
    %c0_i32 = arith.constant 0 : i32
    %c0_i32_0 = arith.constant 0 : i32
    return %arg0, %c0_i32 : i32, i32
  }
  func.func @transform_1(%arg0: i32) -> (i32, i32) {
    %c0_i32 = arith.constant 0 : i32
    %c0_i32_0 = arith.constant 0 : i32
    %c0_i32_1 = arith.constant 0 : i32
    return %c0_i32, %c0_i32_0 : i32, i32
  }
  func.func @transform_2(%arg0: i32) -> (i32, i32) {
    %c0_i32 = arith.constant 0 : i32
    %c0_i32_0 = arith.constant 0 : i32
    %c0_i32_1 = arith.constant 0 : i32
    return %c0_i32, %c0_i32_0 : i32, i32
  }
  func.func @transform_3(%arg0: i32) -> (i32, i32) {
    %c0_i32 = arith.constant 0 : i32
    %c0_i32_0 = arith.constant 0 : i32
    return %arg0, %c0_i32 : i32, i32
  }
}

</mosaic_0001>

<llo_original>
// kernel: tpu_custom_call.1
$region0: #{tpu_custom_call.1}
  #allocation0 [shape = 'u32[]', space=smem, size = 0x4, offset = 0x4, fixed_abs, tag = 'smem constant byte address 0x4 - core index']
  #allocation1 [shape = 'u32[144,128]{1,0:T(1,128)}', space=vmem, size = 0x12000, scoped, tag = 'internal scratch']
  %s0 = inlined_call_operand.hbm [shape: f32[32,64], index: 0, kind: input, shape index: {}]
  %s1 = inlined_call_operand.hbm [shape: f32[64,128], index: 1, kind: input, shape index: {}]
  %s2 = inlined_call_operand.vmem [shape: f32[3,128], index: 2, kind: input, shape index: {}]
  %s3 = inlined_call_operand.hbm [shape: f32[32,128], index: 3, kind: output, shape index: {}]
  %s4 = sld [smem:[#allocation0]]
  $region30: #{tpu_custom_call.1} parent=0
    _
  %s6 = ssub.s32 1, %s4
  %s7 = scalar_select 0, %s6, %s4
  $region1: #{tpu_custom_call.1} parent=0
    #allocation2 [shape = 'u8[16384]{0}', space=vmem, size = 0x4000, scoped, tag = 'input window, operand 0, single buffered']
    #allocation3 [shape = 's32[1]{0}', space=sflag, size = 0x4, scoped, tag = 'scoped memory for tpu_custom_call.1']
    #allocation4 [shape = 's32[1]{0}', space=sflag, size = 0x4, scoped, tag = 'scoped memory for tpu_custom_call.1']
    #allocation5 [shape = 'u8[32768]{0}', space=vmem, size = 0x8000, scoped, tag = 'input window, operand 1, single buffered']
    #allocation6 [shape = 's32[1]{0}', space=sflag, size = 0x4, scoped, tag = 'scoped memory for tpu_custom_call.1']
    #allocation7 [shape = 'u8[16384]{0}', space=vmem, size = 0x4000, scoped, tag = 'output window, operand 0, single buffered']
    %8 = vsyncpa [#allocation3], 0
    %9 = vsyncpa [#allocation6], 0
    %10 = vsyncpa [#allocation4], 0
    // Predicated region
    $region2: #{tpu_custom_call.1} parent=1 // pred_check
      _
    $region3: #{tpu_custom_call.1} parent=1 // pred_check_branch
      %12 = sbr.rel (0) target = $region5
    $region4: #{tpu_custom_call.1} parent=1 // pred_region
      %s14 = ssub.s32 512, 512
      %15 = vsyncadd [#allocation3], %s14
      %s16 = sshll.u32 [#allocation2], 4
      %s17 = int_to_ptr.vmem [resolvable:$true] %s16
      %22 = dma.hbm_to_vmem [thread:$0]  %s0, 512, %s17, [#allocation3], 128, 128, 8
    $region5: #{tpu_custom_call.1} parent=1 // pred_fallthru
      _
    // Predicated region
    $region6: #{tpu_custom_call.1} parent=1 // pred_check
      _
    $region7: #{tpu_custom_call.1} parent=1 // pred_check_branch
      %24 = sbr.rel (0) target = $region9
    $region8: #{tpu_custom_call.1} parent=1 // pred_region
      %s26 = ssub.s32 1024, 1024
      %27 = vsyncadd [#allocation6], %s26
      %s28 = sshll.u32 [#allocation5], 4
      %s29 = int_to_ptr.vmem [resolvable:$true] %s28
      %34 = dma.hbm_to_vmem [thread:$0]  %s1, 1024, %s29, [#allocation6], 128, 128, 8
    $region9: #{tpu_custom_call.1} parent=1 // pred_fallthru
      _
    // Predicated region
    $region10: #{tpu_custom_call.1} parent=1 // pred_check
      _
    $region11: #{tpu_custom_call.1} parent=1 // pred_check_branch
      %36 = sbr.rel (0) target = $region13
    $region12: #{tpu_custom_call.1} parent=1 // pred_region
      _
    $region13: #{tpu_custom_call.1} parent=1 // pred_fallthru
      _
    // Predicated region
    $region14: #{tpu_custom_call.1} parent=1 // pred_check
      _
    $region15: #{tpu_custom_call.1} parent=1 // pred_check_branch
      %38 = sbr.rel (0) target = $region17
    $region16: #{tpu_custom_call.1} parent=1 // pred_region
      %39 = dma.done [#allocation3], 512
    $region17: #{tpu_custom_call.1} parent=1 // pred_fallthru
      _
    // Predicated region
    $region18: #{tpu_custom_call.1} parent=1 // pred_check
      _
    $region19: #{tpu_custom_call.1} parent=1 // pred_check_branch
      %41 = sbr.rel (0) target = $region21
    $region20: #{tpu_custom_call.1} parent=1 // pred_region
      %42 = dma.done [#allocation6], 1024
    $region21: #{tpu_custom_call.1} parent=1 // pred_fallthru
      _
    %v43 = vld [vmem:[%s2] sm:$0x7]
    %v44 = vld [vmem:[#allocation2] sm:$0xff]
    %v45 = vld [vmem:[#allocation2 + $0x8] sm:$0xff]
    %v46 = vld [vmem:[#allocation2 + $0x10] sm:$0xff]
    %v47 = vld [vmem:[#allocation2 + $0x18] sm:$0xff]
    %v48 = vld [vmem:[#allocation5] sm:$0xff]
    %v49 = vld [vmem:[#allocation5 + $0x8] sm:$0xff]
    %v50 = vld [vmem:[#allocation5 + $0x10] sm:$0xff]
    %v51 = vld [vmem:[#allocation5 + $0x18] sm:$0xff]
    %v52 = vld [vmem:[#allocation5 + $0x20] sm:$0xff]
    %v53 = vld [vmem:[#allocation5 + $0x28] sm:$0xff]
    %v54 = vld [vmem:[#allocation5 + $0x30] sm:$0xff]
    %v55 = vld [vmem:[#allocation5 + $0x38] sm:$0xff]
    %v56 = vlaneseq
    %v57 = vshrl.u32 %v56, 7
    %v58 = vsub.s32 0, %v57
    %v59 = vrot.slane %v43, %v58
    %vm60 = vcmask 523264
    %v62 = vsel %vm60, %v44, 0
    %v65 = vsel %vm60, %v45, 0
    %v68 = vsel %vm60, %v46, 0
    %v71 = vsel %vm60, %v47, 0
    %73 = vmatprep.subr.mxu0 0.0
    %74 = vmatpush1.msra.mxu0 %v48
    %75 = vmatprep.subr.mxu0 0.0
    %76 = vmatpush1.msra.mxu0 %v49
    %77 = vmatprep.subr.mxu0 0.0
    %78 = vmatpush1.msra.mxu0 %v50
    %79 = vmatprep.subr.mxu0 0.0
    %80 = vmatpush1.msra.mxu0 %v51
    %81 = vmatprep.subr.mxu0 0.0
    %82 = vmatpush1.msra.mxu0 %v52
    %83 = vmatprep.subr.mxu0 0.0
    %84 = vmatpush1.msra.mxu0 %v53
    %85 = vmatprep.subr.mxu0 0.0
    %86 = vmatpush1.msra.mxu0 %v54
    %87 = vmatprep.subr.mxu0 0.0
    %88 = vmatpush1.msra.mxu0 %v55
    %89 = vmatprep.subr.mxu0 0.0
    %90 = vmatpush1.msra.mxu0 0.0
    %91 = vmatprep.subr.mxu0 0.0
    %92 = vmatpush1.msra.mxu0 0.0
    %93 = vmatprep.subr.mxu0 0.0
    %94 = vmatpush1.msra.mxu0 0.0
    %95 = vmatprep.subr.mxu0 0.0
    %96 = vmatpush1.msra.mxu0 0.0
    %97 = vmatprep.subr.mxu0 0.0
    %98 = vmatpush1.msra.mxu0 0.0
    %99 = vmatprep.subr.mxu0 0.0
    %100 = vmatpush1.msra.mxu0 0.0
    %101 = vmatprep.subr.mxu0 0.0
    %102 = vmatpush1.msra.mxu0 0.0
    %103 = vmatprep.subr.mxu0 0.0
    %104 = vmatpush1.msra.mxu0 0.0
    %105 = vmatprep.subr.mxu0 0.0
    %106 = vmatpush1.msra.mxu0 0.0
    %107 = vmatprep.subr.mxu0 0.0
    %108 = vmatpush1.msra.mxu0 0.0
    %109 = vmatprep.subr.mxu0 0.0
    %110 = vmatpush1.msra.mxu0 0.0
    %111 = vmatprep.subr.mxu0 0.0
    %112 = vmatpush1.msra.mxu0 0.0
    %113 = vmatprep.subr.mxu0 0.0
    %114 = vmatpush1.msra.mxu0 0.0
    %115 = vmatprep.subr.mxu0 0.0
    %116 = vmatpush1.msra.mxu0 0.0
    %117 = vmatprep.subr.mxu0 0.0
    %118 = vmatpush1.msra.mxu0 0.0
    %119 = vmatprep.subr.mxu0 0.0
    %120 = vmatpush1.msra.mxu0 0.0
    %121 = vmatprep.subr.mxu0 0.0
    %122 = vmatpush1.msra.mxu0 0.0
    %123 = vmatprep.subr.mxu0 0.0
    %124 = vmatpush1.msra.mxu0 0.0
    %125 = vmatprep.subr.mxu0 0.0
    %126 = vmatpush1.msra.mxu0 0.0
    %127 = vmatprep.subr.mxu0 0.0
    %128 = vmatpush1.msra.mxu0 0.0
    %129 = vmatprep.subr.mxu0 0.0
    %130 = vmatpush1.msra.mxu0 0.0
    %131 = vmatprep.subr.mxu0 0.0
    %132 = vmatpush1.msra.mxu0 0.0
    %133 = vmatprep.subr.mxu0 0.0
    %134 = vmatpush1.msra.mxu0 0.0
    %135 = vmatprep.subr.mxu0 0.0
    %136 = vmatpush1.msra.mxu0 0.0
    %137 = vmatprep.mubr.f32.mxu0 0.0
    %138 = vmatmul.mubr.f32.gmra.mrb[0].mxu0 %v62
    %v139 = vpop.f32.mrb[0].mxu0
    %v140 = vadd.f32 %v59, %v139
    %v141 = vpop.f32.mrb[0].mxu0
    %142 = vmatprep.mubr.f32.mxu0 0.0
    %143 = vmatmul.mubr.f32.gmra.mrb[0].mxu0 %v65
    %v144 = vpop.f32.mrb[0].mxu0
    %v145 = vadd.f32 %v59, %v144
    %v146 = vpop.f32.mrb[0].mxu0
    %147 = vmatprep.mubr.f32.mxu0 0.0
    %148 = vmatmul.mubr.f32.gmra.mrb[0].mxu0 %v68
    %v149 = vpop.f32.mrb[0].mxu0
    %v150 = vadd.f32 %v59, %v149
    %v151 = vpop.f32.mrb[0].mxu0
    %152 = vmatprep.mubr.f32.mxu0 0.0
    %153 = vmatmul.mubr.f32.gmra.mrb[0].mxu0 %v71
    %v154 = vpop.f32.mrb[0].mxu0
    %v155 = vadd.f32 %v59, %v154
    %v156 = vpop.f32.mrb[0].mxu0
    %157 = vdwg.mxu0
    %158 = vadd.xlane.f32.xlu0 %v140
    %v159 = vpop.xlane.xlu0 %158
    %160 = vadd.xlane.f32.xlu0 %v145
    %v161 = vpop.xlane.xlu0 %160
    %162 = vadd.xlane.f32.xlu0 %v150
    %v163 = vpop.xlane.xlu0 %162
    %164 = vadd.xlane.f32.xlu0 %v155
    %v165 = vpop.xlane.xlu0 %164
    %v166 = vrcp.pop 128.0
    %v167 = vmul.f32 %v159, %v166
    %v168 = vmul.f32 %v161, %v166
    %v169 = vmul.f32 %v163, %v166
    %v170 = vmul.f32 %v165, %v166
    %v171 = vsub.f32 %v140, %v167
    %v172 = vsub.f32 %v145, %v168
    %v173 = vsub.f32 %v150, %v169
    %v174 = vsub.f32 %v155, %v170
    %v175 = vmul.f32 %v171, %v171
    %v176 = vmul.f32 %v172, %v172
    %v177 = vmul.f32 %v173, %v173
    %v178 = vmul.f32 %v174, %v174
    %179 = vadd.xlane.f32.xlu0 %v175
    %v180 = vpop.xlane.xlu0 %179
    %181 = vadd.xlane.f32.xlu0 %v176
    %v182 = vpop.xlane.xlu0 %181
    %183 = vadd.xlane.f32.xlu0 %v177
    %v184 = vpop.xlane.xlu0 %183
    %185 = vadd.xlane.f32.xlu0 %v178
    %v186 = vpop.xlane.xlu0 %185
    %v187 = vmul.f32 %v180, %v166
    %v188 = vmul.f32 %v182, %v166
    %v189 = vmul.f32 %v184, %v166
    %v190 = vmul.f32 %v186, %v166
    %v191 = vadd.f32 %v187, 1e-05
    %v192 = vadd.f32 %v188, 1e-05
    %v193 = vadd.f32 %v189, 1e-05
    %v194 = vadd.f32 %v190, 1e-05
    %v195 = vrsqrt.pop %v191
    %v196 = vrsqrt.pop %v192
    %v197 = vrsqrt.pop %v193
    %v198 = vrsqrt.pop %v194
    %v199 = vmul.f32 %v171, %v195
    %v200 = vmul.f32 %v172, %v196
    %v201 = vmul.f32 %v173, %v197
    %v202 = vmul.f32 %v174, %v198
    %v203 = vlaneseq
    %v204 = vshrl.u32 %v203, 7
    %v205 = vsub.s32 1, %v204
    %v206 = vrot.slane %v43, %v205
    %v207 = vmul.f32 %v199, %v206
    %v208 = vmul.f32 %v200, %v206
    %v209 = vmul.f32 %v201, %v206
    %v210 = vmul.f32 %v202, %v206
    %v211 = vlaneseq
    %v212 = vshrl.u32 %v211, 7
    %v213 = vsub.s32 2, %v212
    %v214 = vrot.slane %v43, %v213
    %v215 = vadd.f32 %v207, %v214
    %v216 = vadd.f32 %v208, %v214
    %v217 = vadd.f32 %v209, %v214
    %v218 = vadd.f32 %v210, %v214
    %219 = vst [vmem:[#allocation7] sm:$0xff] %v215
    %220 = vst [vmem:[#allocation7 + $0x8] sm:$0xff] %v216
    %221 = vst [vmem:[#allocation7 + $0x10] sm:$0xff] %v217
    %222 = vst [vmem:[#allocation7 + $0x18] sm:$0xff] %v218
    // Predicated region
    $region22: #{tpu_custom_call.1} parent=1 // pred_check
      _
    $region23: #{tpu_custom_call.1} parent=1 // pred_check_branch
      %224 = sbr.rel (0) target = $region25
    $region24: #{tpu_custom_call.1} parent=1 // pred_region
      %s226 = ssub.s32 512, 512
      %227 = vsyncadd [#allocation4], %s226
      %s228 = sshll.u32 [#allocation7], 4
      %s229 = int_to_ptr.vmem [resolvable:$true] %s228
      %234 = dma.vmem_to_hbm [thread:$0]  %s229, 512, %s3, [#allocation4], 128, 128, 8
    $region25: #{tpu_custom_call.1} parent=1 // pred_fallthru
      _
    // Predicated region
    $region26: #{tpu_custom_call.1} parent=1 // pred_check
      _
    $region27: #{tpu_custom_call.1} parent=1 // pred_check_branch
      %236 = sbr.rel (0) target = $region29
    $region28: #{tpu_custom_call.1} parent=1 // pred_region
      %237 = dma.done [#allocation4], 512
    $region29: #{tpu_custom_call.1} parent=1 // pred_fallthru
      _
    %238 = vsyncpa [#allocation3], 1
    %239 = vsyncpa [#allocation6], 1
    %240 = vsyncpa [#allocation4], 1

</llo_original>
